<compile_context>
chip_gen: v5e
topology: v5e:2x2
jax: 0.10.0
libtpu: 0.0.40
codegen_flags: <defaults>
</compile_context>

<pallas_src>
import functools

import jax
import jax.numpy as jnp
from jax.experimental import pallas as pl
from jax.experimental.pallas import tpu as pltpu


# --------------------------------------------------------------------------------------
# Kernel
# --------------------------------------------------------------------------------------
def _encoder_block_kernel(num_heads, head_dim, mlp_chunk,
                          x_ref, gamma_ref, beta_ref,
                          wqkv_ref, bqkv_ref,
                          wo_ref, bo_ref,
                          w1_ref, b1_ref, w2_ref, b2_ref,
                          o_ref, heads_ref):
    bt, seq, emb = x_ref.shape
    H, D = num_heads, head_dim

    x3 = x_ref[...]                               # (bt, S, E) f32
    # Merge batch and sequence: layout-preserving when S % 8 == 0 (f32 sublane tile).
    x = x3.reshape(bt * seq, emb)                 # (bt*S, E) token-major
    gamma = gamma_ref[...]                        # (1, E) f32
    beta = beta_ref[...]                          # (1, E) f32

    def layer_norm(z):                            # shared nn.LayerNorm(E), eps=1e-5, f32
        mu = jnp.mean(z, axis=-1, keepdims=True)
        var = jnp.mean((z - mu) ** 2, axis=-1, keepdims=True)
        return (z - mu) * jax.lax.rsqrt(var + 1e-5) * gamma + beta

    # ---- first LayerNorm ----
    xn_b = layer_norm(x).astype(jnp.bfloat16)

    # ---- fused QKV projection: one MXU launch with N = 3E ----
    qkv = jnp.dot(xn_b, wqkv_ref[...],
                  preferred_element_type=jnp.float32) + bqkv_ref[...]   # (bt*S, 3E) f32

    scale = 1.0 / (D ** 0.5)
    q = (qkv[:, :emb] * scale).astype(jnp.bfloat16).reshape(bt, seq, emb)
    k = qkv[:, emb:2 * emb].astype(jnp.bfloat16).reshape(bt, seq, emb)
    v = qkv[:, 2 * emb:].astype(jnp.bfloat16).reshape(bt, seq, emb)

    # ---- attention: static loop over heads, batched (bt) dot_generals per head ----
    for h in range(H):
        cols = slice(h * D, (h + 1) * D)
        qh = q[:, :, cols]                        # (bt, S, D) bf16
        kh = k[:, :, cols]
        vh = v[:, :, cols]
        s = jnp.einsum("bqd,bkd->bqk", qh, kh,
                       preferred_element_type=jnp.float32)              # (bt, S, S) f32
        s = s - jnp.max(s, axis=-1, keepdims=True)
        p = jnp.exp(s)
        p = p * pl.reciprocal(jnp.sum(p, axis=-1, keepdims=True), approx=True)
        hout = jnp.einsum("bqk,bkd->bqd", p.astype(jnp.bfloat16), vh,
                          preferred_element_type=jnp.float32)           # (bt, S, D) f32
        heads_ref[:, :, cols] = hout.astype(jnp.bfloat16)               # concat via scratch

    # ---- single K = E output projection over all heads / batch elements ----
    heads = heads_ref[...].reshape(bt * seq, emb)                       # (bt*S, E) bf16
    attn = jnp.dot(heads, wo_ref[...],
                   preferred_element_type=jnp.float32) + bo_ref[...]

    first_added = attn + x                        # residual 1 (exact f32 residual)

    # ---- second LayerNorm (same shared nn.LayerNorm) ----
    yn_b = layer_norm(first_added).astype(jnp.bfloat16)

    # ---- MLP: Linear(E, 4E) -> GELU(exact erf) -> Linear(4E, E), hidden-dim tiled ----
    hidden = w1_ref.shape[1]
    h2 = jnp.zeros((bt * seq, emb), jnp.float32)
    for c0 in range(0, hidden, mlp_chunk):
        csl = slice(c0, c0 + mlp_chunk)
        h1 = jnp.dot(yn_b, w1_ref[:, csl],
                     preferred_element_type=jnp.float32) + b1_ref[:, csl]
        h1 = 0.5 * h1 * (1.0 + jax.lax.erf(h1 * (2.0 ** -0.5)))
        h2 = h2 + jnp.dot(h1.astype(jnp.bfloat16), w2_ref[csl, :],
                          preferred_element_type=jnp.float32)
    h2 = h2 + b2_ref[...]

    out = (h2 + first_added).astype(o_ref.dtype)  # residual 2
    o_ref[...] = out.reshape(bt, seq, emb)


# --------------------------------------------------------------------------------------
# Wrapper helpers
# --------------------------------------------------------------------------------------
def _tpu_generation():
    try:
        kind = jax.devices()[0].device_kind.lower()
    except (RuntimeError, IndexError):
        return 6
    for g in (7, 6, 5, 4):
        if f"v{g}" in kind:
            return g
    return 6


def _pick_batch_tile(B, S, gen):
    # Target tokens per grid step: smaller on v7x (64 MiB VMEM/TC), bigger on v5e/v6e.
    target_rows = 512 if gen >= 7 else 1024
    divisors = [d for d in range(1, B + 1) if B % d == 0]
    fit = [d for d in divisors if d * S <= target_rows]
    bt = max(fit) if fit else 1
    # v7x has 2 TensorCores: keep at least 2 parallel grid steps when possible.
    if gen >= 7 and B >= 2 and B // bt < 2:
        smaller = [d for d in divisors if B // d >= 2]
        if smaller:
            bt = max(smaller)
    return bt


def _supports_single_buffering():
    """Narrow feature check for BlockSpec(pipeline_mode=pl.Buffered(1))."""
    if not hasattr(pl, "Buffered"):
        return False
    try:
        pl.BlockSpec((8, 128), lambda i: (0, 0), pipeline_mode=pl.Buffered(1))
    except TypeError:
        return False
    return True


# --------------------------------------------------------------------------------------
# Public entry points
# --------------------------------------------------------------------------------------
def encoder_block_batch_major(x_bse, params, num_heads, batch_tile=None):
    """x_bse: (B, S, E) float32 batch-major activations (no HBM transposes)."""
    B, S, E = x_bse.shape
    assert E % num_heads == 0
    head_dim = E // num_heads

    gen = _tpu_generation()
    bt = batch_tile if batch_tile is not None else _pick_batch_tile(B, S, gen)
    assert B % bt == 0, "batch must be divisible by the batch tile"

    hidden = 4 * E
    mlp_chunk = hidden
    if hidden > 1024:
        for c in (1024, 512, 256, 128):
            if hidden % c == 0:
                mlp_chunk = c
                break

    bf16 = jnp.bfloat16
    wqkv = params["w_qkv"].astype(bf16)
    wo = params["wo"].astype(bf16)
    w1 = params["w1"].astype(bf16)
    w2 = params["w2"].astype(bf16)

    kernel = functools.partial(_encoder_block_kernel, num_heads, head_dim, mlp_chunk)

    single_buf = _supports_single_buffering()

    def const(shape):
        idx = lambda i, _n=len(shape): (0,) * _n      # grid-invariant → resident
        if single_buf:
            return pl.BlockSpec(shape, idx, pipeline_mode=pl.Buffered(1))
        return pl.BlockSpec(shape, idx)

    vmem_limit = (48 << 20) if gen >= 7 else (100 << 20)

    return pl.pallas_call(
        kernel,
        out_shape=jax.ShapeDtypeStruct((B, S, E), x_bse.dtype),
        grid=(B // bt,),
        in_specs=[
            pl.BlockSpec((bt, S, E), lambda i: (i, 0, 0)),   # x
            const((1, E)), const((1, E)),                    # LN gamma / beta
            const((E, 3 * E)), const((1, 3 * E)),            # fused Wqkv (bf16), bqkv
            const((E, E)), const((1, E)),                    # Wo (bf16), bo
            const((E, 4 * E)), const((1, 4 * E)),            # W1 (bf16), b1
            const((4 * E, E)), const((1, E)),                # W2 (bf16), b2
        ],
        out_specs=pl.BlockSpec((bt, S, E), lambda i: (i, 0, 0)),
        scratch_shapes=[pltpu.VMEM((bt, S, E), jnp.bfloat16)],   # concatenated head outputs
        compiler_params=pltpu.CompilerParams(
            dimension_semantics=("parallel",),
            vmem_limit_bytes=vmem_limit),
    )(x_bse,
      params["gamma"], params["beta"],
      wqkv, params["b_qkv"],
      wo, params["bo"],
      w1, params["b1"], w2, params["b2"])


def encoder_block(emb_patches, params, num_heads, batch_tile=None):
    """emb_patches: (S, B, E) float32 — PyTorch seq-first parity wrapper."""
    x = jnp.transpose(emb_patches, (1, 0, 2))     # (B, S, E)
    out = encoder_block_batch_major(x, params, num_heads, batch_tile)
    return jnp.transpose(out, (1, 0, 2))          # back to (S, B, E)


# --------------------------------------------------------------------------------------
# Parameters and pure-JAX reference
# --------------------------------------------------------------------------------------
def init_params(key, latent_size):
    """Deterministic synthetic f32 master parameters matching EncoderBlock's shapes."""
    E = latent_size
    ks = jax.random.split(key, 10)

    def w(k, shape, scale=0.05):
        return (scale * jax.random.normal(k, shape)).astype(jnp.float32)

    # nn.MultiheadAttention: in_proj_weight (3E, E), in_proj_bias (3E,), out_proj (E, E)+(E,)
    in_proj_w = w(ks[0], (3 * E, E))
    in_proj_b = w(ks[1], (3 * E,))
    out_proj_w = w(ks[2], (E, E))
    out_proj_b = w(ks[3], (E,))
    # enc_MLP: Linear(E, 4E), Linear(4E, E)
    w1 = w(ks[4], (4 * E, E))
    b1 = w(ks[5], (4 * E,))
    w2 = w(ks[6], (E, 4 * E))
    b2 = w(ks[7], (E,))
    # shared nn.LayerNorm(E)
    gamma = (1.0 + w(ks[8], (E,))).astype(jnp.float32)
    beta = w(ks[9], (E,))

    # Kernel consumes right-multiplication weights (x @ W), so transpose torch (out,in).
    return {
        "gamma": gamma.reshape(1, E),
        "beta": beta.reshape(1, E),
        "w_qkv": in_proj_w.T,                    # (E, 3E): columns [Wq.T | Wk.T | Wv.T]
        "b_qkv": in_proj_b.reshape(1, 3 * E),
        "wo": out_proj_w.T, "bo": out_proj_b.reshape(1, E),
        "w1": w1.T, "b1": b1.reshape(1, 4 * E),
        "w2": w2.T, "b2": b2.reshape(1, E),
    }


def reference(emb_patches, p, num_heads):
    """Pure-JAX f32 reference mirroring PyTorch EncoderBlock.forward (eval mode)."""
    S, B, E = emb_patches.shape
    D = E // num_heads
    x = jnp.transpose(emb_patches, (1, 0, 2))   # (B, S, E)

    def ln(z):
        mu = z.mean(-1, keepdims=True)
        var = ((z - mu) ** 2).mean(-1, keepdims=True)
        return (z - mu) / jnp.sqrt(var + 1e-5) * p["gamma"] + p["beta"]

    xn = ln(x)
    qkv = xn @ p["w_qkv"] + p["b_qkv"]
    q, k, v = qkv[..., :E], qkv[..., E:2 * E], qkv[..., 2 * E:]
    qh = q.reshape(B, S, num_heads, D).transpose(0, 2, 1, 3) / jnp.sqrt(D)
    kh = k.reshape(B, S, num_heads, D).transpose(0, 2, 1, 3)
    vh = v.reshape(B, S, num_heads, D).transpose(0, 2, 1, 3)
    s = jnp.einsum("bhqd,bhkd->bhqk", qh, kh)
    pattn = jax.nn.softmax(s, axis=-1)
    attn = jnp.einsum("bhqk,bhkd->bhqd", pattn, vh).transpose(0, 2, 1, 3).reshape(B, S, E)
    attn = attn @ p["wo"] + p["bo"]
    first_added = attn + x
    yn = ln(first_added)
    h1 = yn @ p["w1"] + p["b1"]
    h1 = 0.5 * h1 * (1.0 + jax.lax.erf(h1 / jnp.sqrt(2.0)))
    h2 = h1 @ p["w2"] + p["b2"]
    out = h2 + first_added
    return jnp.transpose(out, (1, 0, 2))        # (S, B, E)


if __name__ == "__main__":
    S, B, E, H = 8, 2, 32, 4     # seq, batch, latent_size, num_heads

    key = jax.random.PRNGKey(0)
    kx, kp = jax.random.split(key)
    emb_patches = jax.random.normal(kx, (S, B, E), dtype=jnp.float32)
    params = init_params(kp, E)

    out = encoder_block(emb_patches, params, H)
    out = jax.block_until_ready(out)

    ref = reference(emb_patches, params, H)
    assert out.shape == (S, B, E)
    # bf16 matmul operands → loosened tolerance vs. the f32 reference.
    assert jnp.allclose(out, ref, rtol=2e-2, atol=2e-2), \
        f"max abs err = {jnp.max(jnp.abs(out - ref))}"

    print("KERNEL_OK")
</pallas_src>

<mosaic_0001>
module attributes {stable_mosaic.version = 11 : i64} {
  func.func @_encoder_block_kernel(%arg0: i32, %arg1: memref<2x8x32xf32, #tpu.memory_space<vmem>>, %arg2: memref<1x32xf32, #tpu.memory_space<vmem>>, %arg3: memref<1x32xf32, #tpu.memory_space<vmem>>, %arg4: memref<32x96xbf16, #tpu.memory_space<vmem>>, %arg5: memref<1x96xf32, #tpu.memory_space<vmem>>, %arg6: memref<32x32xbf16, #tpu.memory_space<vmem>>, %arg7: memref<1x32xf32, #tpu.memory_space<vmem>>, %arg8: memref<32x128xbf16, #tpu.memory_space<vmem>>, %arg9: memref<1x128xf32, #tpu.memory_space<vmem>>, %arg10: memref<128x32xbf16, #tpu.memory_space<vmem>>, %arg11: memref<1x32xf32, #tpu.memory_space<vmem>>, %arg12: memref<2x8x32xf32, #tpu.memory_space<vmem>>, %arg13: memref<2x8x32xbf16, #tpu.memory_space<vmem>>) attributes {dimension_semantics = [#tpu.dimension_semantics<parallel>], iteration_bounds = array<i64: 1>, scalar_prefetch = 0 : i64, scratch_operands = 1 : i64, tpu.core_type = #tpu.core_type<tc>, window_params = [{transform_indices = @transform_0, window_bounds = array<i64: 2, 8, 32>}, {pipeline_mode = #tpu.pipeline_mode<synchronous>, transform_indices = @transform_1, window_bounds = array<i64: 1, 32>}, {pipeline_mode = #tpu.pipeline_mode<synchronous>, transform_indices = @transform_2, window_bounds = array<i64: 1, 32>}, {pipeline_mode = #tpu.pipeline_mode<synchronous>, transform_indices = @transform_3, window_bounds = array<i64: 32, 96>}, {pipeline_mode = #tpu.pipeline_mode<synchronous>, transform_indices = @transform_4, window_bounds = array<i64: 1, 96>}, {pipeline_mode = #tpu.pipeline_mode<synchronous>, transform_indices = @transform_5, window_bounds = array<i64: 32, 32>}, {pipeline_mode = #tpu.pipeline_mode<synchronous>, transform_indices = @transform_6, window_bounds = array<i64: 1, 32>}, {pipeline_mode = #tpu.pipeline_mode<synchronous>, transform_indices = @transform_7, window_bounds = array<i64: 32, 128>}, {pipeline_mode = #tpu.pipeline_mode<synchronous>, transform_indices = @transform_8, window_bounds = array<i64: 1, 128>}, {pipeline_mode = #tpu.pipeline_mode<synchronous>, transform_indices = @transform_9, window_bounds = array<i64: 128, 32>}, {pipeline_mode = #tpu.pipeline_mode<synchronous>, transform_indices = @transform_10, window_bounds = array<i64: 1, 32>}, {transform_indices = @transform_11, window_bounds = array<i64: 2, 8, 32>}]} {
    %c0 = arith.constant 0 : index
    %c0_0 = arith.constant 0 : index
    %c0_1 = arith.constant 0 : index
    %0 = vector.load %arg1[%c0, %c0_0, %c0_1] : memref<2x8x32xf32, #tpu.memory_space<vmem>>, vector<2x8x32xf32>
    %1 = vector.shape_cast %0 : vector<2x8x32xf32> to vector<16x32xf32>
    %c0_2 = arith.constant 0 : index
    %c0_3 = arith.constant 0 : index
    %2 = vector.load %arg2[%c0_2, %c0_3] : memref<1x32xf32, #tpu.memory_space<vmem>>, vector<1x32xf32>
    %c0_4 = arith.constant 0 : index
    %c0_5 = arith.constant 0 : index
    %3 = vector.load %arg3[%c0_4, %c0_5] : memref<1x32xf32, #tpu.memory_space<vmem>>, vector<1x32xf32>
    %cst = arith.constant dense<0.000000e+00> : vector<16xf32>
    %4 = vector.multi_reduction <add>, %1, %cst [1] : vector<16x32xf32> to vector<16xf32>
    %5 = vector.shape_cast %4 : vector<16xf32> to vector<16x1xf32>
    %cst_6 = arith.constant 3.200000e+01 : f32
    %6 = vector.broadcast %cst_6 : f32 to vector<16x1xf32>
    %7 = arith.divf %5, %6 : vector<16x1xf32>
    %8 = vector.broadcast %7 : vector<16x1xf32> to vector<16x32xf32>
    %9 = arith.subf %1, %8 : vector<16x32xf32>
    %10 = arith.mulf %9, %9 : vector<16x32xf32>
    %cst_7 = arith.constant dense<0.000000e+00> : vector<16xf32>
    %11 = vector.multi_reduction <add>, %10, %cst_7 [1] : vector<16x32xf32> to vector<16xf32>
    %12 = vector.shape_cast %11 : vector<16xf32> to vector<16x1xf32>
    %cst_8 = arith.constant 3.200000e+01 : f32
    %13 = vector.broadcast %cst_8 : f32 to vector<16x1xf32>
    %14 = arith.divf %12, %13 : vector<16x1xf32>
    %15 = vector.broadcast %7 : vector<16x1xf32> to vector<16x32xf32>
    %16 = arith.subf %1, %15 : vector<16x32xf32>
    %cst_9 = arith.constant 9.99999974E-6 : f32
    %17 = vector.broadcast %cst_9 : f32 to vector<16x1xf32>
    %18 = arith.addf %14, %17 : vector<16x1xf32>
    %19 = math.rsqrt %18 : vector<16x1xf32>
    %20 = vector.broadcast %19 : vector<16x1xf32> to vector<16x32xf32>
    %21 = arith.mulf %16, %20 : vector<16x32xf32>
    %22 = vector.broadcast %2 : vector<1x32xf32> to vector<16x32xf32>
    %23 = arith.mulf %21, %22 : vector<16x32xf32>
    %24 = vector.broadcast %3 : vector<1x32xf32> to vector<16x32xf32>
    %25 = arith.addf %23, %24 : vector<16x32xf32>
    %26 = arith.truncf %25 : vector<16x32xf32> to vector<16x32xbf16>
    %c0_10 = arith.constant 0 : index
    %c0_11 = arith.constant 0 : index
    %27 = vector.load %arg4[%c0_10, %c0_11] : memref<32x96xbf16, #tpu.memory_space<vmem>>, vector<32x96xbf16>
    %cst_12 = arith.constant dense<0.000000e+00> : vector<16x96xf32>
    %28 = tpu.matmul %26, %27, %cst_12 {dimension_numbers = #tpu.dot_dimension_numbers<[1], [0], [0], [1], [0, 0, 1, 1], [], []>} : vector<16x32xbf16>, vector<32x96xbf16>, vector<16x96xf32> -> vector<16x96xf32>
    %c0_13 = arith.constant 0 : index
    %c0_14 = arith.constant 0 : index
    %29 = vector.load %arg5[%c0_13, %c0_14] : memref<1x96xf32, #tpu.memory_space<vmem>>, vector<1x96xf32>
    %30 = vector.broadcast %29 : vector<1x96xf32> to vector<16x96xf32>
    %31 = arith.addf %28, %30 : vector<16x96xf32>
    %32 = vector.extract_strided_slice %31 {offsets = [0, 0], sizes = [16, 32], strides = [1, 1]} : vector<16x96xf32> to vector<16x32xf32>
    %cst_15 = arith.constant 0.353553385 : f32
    %33 = vector.broadcast %cst_15 : f32 to vector<16x32xf32>
    %34 = arith.mulf %32, %33 : vector<16x32xf32>
    %35 = arith.truncf %34 : vector<16x32xf32> to vector<16x32xbf16>
    %36 = vector.shape_cast %35 : vector<16x32xbf16> to vector<2x8x32xbf16>
    %37 = vector.extract_strided_slice %31 {offsets = [0, 32], sizes = [16, 32], strides = [1, 1]} : vector<16x96xf32> to vector<16x32xf32>
    %38 = arith.truncf %37 : vector<16x32xf32> to vector<16x32xbf16>
    %39 = vector.shape_cast %38 : vector<16x32xbf16> to vector<2x8x32xbf16>
    %40 = vector.extract_strided_slice %31 {offsets = [0, 64], sizes = [16, 32], strides = [1, 1]} : vector<16x96xf32> to vector<16x32xf32>
    %41 = arith.truncf %40 : vector<16x32xf32> to vector<16x32xbf16>
    %42 = vector.shape_cast %41 : vector<16x32xbf16> to vector<2x8x32xbf16>
    %43 = vector.extract_strided_slice %36 {offsets = [0, 0, 0], sizes = [2, 8, 8], strides = [1, 1, 1]} : vector<2x8x32xbf16> to vector<2x8x8xbf16>
    %44 = vector.extract_strided_slice %39 {offsets = [0, 0, 0], sizes = [2, 8, 8], strides = [1, 1, 1]} : vector<2x8x32xbf16> to vector<2x8x8xbf16>
    %45 = vector.extract_strided_slice %42 {offsets = [0, 0, 0], sizes = [2, 8, 8], strides = [1, 1, 1]} : vector<2x8x32xbf16> to vector<2x8x8xbf16>
    "tpu.trace_start"() <{level = 10 : i32, message = "bqd,bkd->bqk"}> : () -> ()
    %cst_16 = arith.constant dense<0.000000e+00> : vector<2x8x8xf32>
    %46 = tpu.matmul %43, %44, %cst_16 {dimension_numbers = #tpu.dot_dimension_numbers<[2], [2], [1], [1], [0, 0, 0, 1, 1, 1], [0], [0]>} : vector<2x8x8xbf16>, vector<2x8x8xbf16>, vector<2x8x8xf32> -> vector<2x8x8xf32>
    "tpu.trace_stop"() : () -> ()
    %cst_17 = arith.constant dense<0xFF800000> : vector<2x8xf32>
    %47 = vector.multi_reduction <maximumf>, %46, %cst_17 [2] : vector<2x8x8xf32> to vector<2x8xf32>
    %48 = vector.shape_cast %47 : vector<2x8xf32> to vector<2x8x1xf32>
    %49 = vector.broadcast %48 : vector<2x8x1xf32> to vector<2x8x8xf32>
    %50 = arith.subf %46, %49 : vector<2x8x8xf32>
    %51 = math.exp %50 : vector<2x8x8xf32>
    %cst_18 = arith.constant dense<0.000000e+00> : vector<2x8xf32>
    %52 = vector.multi_reduction <add>, %51, %cst_18 [2] : vector<2x8x8xf32> to vector<2x8xf32>
    %53 = vector.shape_cast %52 : vector<2x8xf32> to vector<2x8x1xf32>
    %54 = tpu.reciprocal %53 {approx = true} : vector<2x8x1xf32> -> vector<2x8x1xf32>
    %55 = vector.broadcast %54 : vector<2x8x1xf32> to vector<2x8x8xf32>
    %56 = arith.mulf %51, %55 : vector<2x8x8xf32>
    %57 = arith.truncf %56 : vector<2x8x8xf32> to vector<2x8x8xbf16>
    "tpu.trace_start"() <{level = 10 : i32, message = "bqk,bkd->bqd"}> : () -> ()
    %cst_19 = arith.constant dense<0.000000e+00> : vector<2x8x8xf32>
    %58 = tpu.matmul %57, %45, %cst_19 {dimension_numbers = #tpu.dot_dimension_numbers<[2], [1], [1], [2], [0, 0, 0, 1, 1, 2], [0], [0]>} : vector<2x8x8xbf16>, vector<2x8x8xbf16>, vector<2x8x8xf32> -> vector<2x8x8xf32>
    "tpu.trace_stop"() : () -> ()
    %59 = arith.truncf %58 : vector<2x8x8xf32> to vector<2x8x8xbf16>
    %c0_20 = arith.constant 0 : index
    %c0_21 = arith.constant 0 : index
    %c0_22 = arith.constant 0 : index
    %60 = vector.load %arg13[%c0_20, %c0_21, %c0_22] : memref<2x8x32xbf16, #tpu.memory_space<vmem>>, vector<2x8x8xbf16>
    tpu.vector_store %arg13[%c0_20, %c0_21, %c0_22], %59 {strides = array<i32>} : memref<2x8x32xbf16, #tpu.memory_space<vmem>>, vector<2x8x8xbf16>,
    %61 = vector.extract_strided_slice %36 {offsets = [0, 0, 8], sizes = [2, 8, 8], strides = [1, 1, 1]} : vector<2x8x32xbf16> to vector<2x8x8xbf16>
    %62 = vector.extract_strided_slice %39 {offsets = [0, 0, 8], sizes = [2, 8, 8], strides = [1, 1, 1]} : vector<2x8x32xbf16> to vector<2x8x8xbf16>
    %63 = vector.extract_strided_slice %42 {offsets = [0, 0, 8], sizes = [2, 8, 8], strides = [1, 1, 1]} : vector<2x8x32xbf16> to vector<2x8x8xbf16>
    "tpu.trace_start"() <{level = 10 : i32, message = "bqd,bkd->bqk"}> : () -> ()
    %cst_23 = arith.constant dense<0.000000e+00> : vector<2x8x8xf32>
    %64 = tpu.matmul %61, %62, %cst_23 {dimension_numbers = #tpu.dot_dimension_numbers<[2], [2], [1], [1], [0, 0, 0, 1, 1, 1], [0], [0]>} : vector<2x8x8xbf16>, vector<2x8x8xbf16>, vector<2x8x8xf32> -> vector<2x8x8xf32>
    "tpu.trace_stop"() : () -> ()
    %cst_24 = arith.constant dense<0xFF800000> : vector<2x8xf32>
    %65 = vector.multi_reduction <maximumf>, %64, %cst_24 [2] : vector<2x8x8xf32> to vector<2x8xf32>
    %66 = vector.shape_cast %65 : vector<2x8xf32> to vector<2x8x1xf32>
    %67 = vector.broadcast %66 : vector<2x8x1xf32> to vector<2x8x8xf32>
    %68 = arith.subf %64, %67 : vector<2x8x8xf32>
    %69 = math.exp %68 : vector<2x8x8xf32>
    %cst_25 = arith.constant dense<0.000000e+00> : vector<2x8xf32>
    %70 = vector.multi_reduction <add>, %69, %cst_25 [2] : vector<2x8x8xf32> to vector<2x8xf32>
    %71 = vector.shape_cast %70 : vector<2x8xf32> to vector<2x8x1xf32>
    %72 = tpu.reciprocal %71 {approx = true} : vector<2x8x1xf32> -> vector<2x8x1xf32>
    %73 = vector.broadcast %72 : vector<2x8x1xf32> to vector<2x8x8xf32>
    %74 = arith.mulf %69, %73 : vector<2x8x8xf32>
    %75 = arith.truncf %74 : vector<2x8x8xf32> to vector<2x8x8xbf16>
    "tpu.trace_start"() <{level = 10 : i32, message = "bqk,bkd->bqd"}> : () -> ()
    %cst_26 = arith.constant dense<0.000000e+00> : vector<2x8x8xf32>
    %76 = tpu.matmul %75, %63, %cst_26 {dimension_numbers = #tpu.dot_dimension_numbers<[2], [1], [1], [2], [0, 0, 0, 1, 1, 2], [0], [0]>} : vector<2x8x8xbf16>, vector<2x8x8xbf16>, vector<2x8x8xf32> -> vector<2x8x8xf32>
    "tpu.trace_stop"() : () -> ()
    %77 = arith.truncf %76 : vector<2x8x8xf32> to vector<2x8x8xbf16>
    %c0_27 = arith.constant 0 : index
    %c0_28 = arith.constant 0 : index
    %c8 = arith.constant 8 : index
    %78 = vector.load %arg13[%c0_27, %c0_28, %c8] : memref<2x8x32xbf16, #tpu.memory_space<vmem>>, vector<2x8x8xbf16>
    tpu.vector_store %arg13[%c0_27, %c0_28, %c8], %77 {strides = array<i32>} : memref<2x8x32xbf16, #tpu.memory_space<vmem>>, vector<2x8x8xbf16>,
    %79 = vector.extract_strided_slice %36 {offsets = [0, 0, 16], sizes = [2, 8, 8], strides = [1, 1, 1]} : vector<2x8x32xbf16> to vector<2x8x8xbf16>
    %80 = vector.extract_strided_slice %39 {offsets = [0, 0, 16], sizes = [2, 8, 8], strides = [1, 1, 1]} : vector<2x8x32xbf16> to vector<2x8x8xbf16>
    %81 = vector.extract_strided_slice %42 {offsets = [0, 0, 16], sizes = [2, 8, 8], strides = [1, 1, 1]} : vector<2x8x32xbf16> to vector<2x8x8xbf16>
    "tpu.trace_start"() <{level = 10 : i32, message = "bqd,bkd->bqk"}> : () -> ()
    %cst_29 = arith.constant dense<0.000000e+00> : vector<2x8x8xf32>
    %82 = tpu.matmul %79, %80, %cst_29 {dimension_numbers = #tpu.dot_dimension_numbers<[2], [2], [1], [1], [0, 0, 0, 1, 1, 1], [0], [0]>} : vector<2x8x8xbf16>, vector<2x8x8xbf16>, vector<2x8x8xf32> -> vector<2x8x8xf32>
    "tpu.trace_stop"() : () -> ()
    %cst_30 = arith.constant dense<0xFF800000> : vector<2x8xf32>
    %83 = vector.multi_reduction <maximumf>, %82, %cst_30 [2] : vector<2x8x8xf32> to vector<2x8xf32>
    %84 = vector.shape_cast %83 : vector<2x8xf32> to vector<2x8x1xf32>
    %85 = vector.broadcast %84 : vector<2x8x1xf32> to vector<2x8x8xf32>
    %86 = arith.subf %82, %85 : vector<2x8x8xf32>
    %87 = math.exp %86 : vector<2x8x8xf32>
    %cst_31 = arith.constant dense<0.000000e+00> : vector<2x8xf32>
    %88 = vector.multi_reduction <add>, %87, %cst_31 [2] : vector<2x8x8xf32> to vector<2x8xf32>
    %89 = vector.shape_cast %88 : vector<2x8xf32> to vector<2x8x1xf32>
    %90 = tpu.reciprocal %89 {approx = true} : vector<2x8x1xf32> -> vector<2x8x1xf32>
    %91 = vector.broadcast %90 : vector<2x8x1xf32> to vector<2x8x8xf32>
    %92 = arith.mulf %87, %91 : vector<2x8x8xf32>
    %93 = arith.truncf %92 : vector<2x8x8xf32> to vector<2x8x8xbf16>
    "tpu.trace_start"() <{level = 10 : i32, message = "bqk,bkd->bqd"}> : () -> ()
    %cst_32 = arith.constant dense<0.000000e+00> : vector<2x8x8xf32>
    %94 = tpu.matmul %93, %81, %cst_32 {dimension_numbers = #tpu.dot_dimension_numbers<[2], [1], [1], [2], [0, 0, 0, 1, 1, 2], [0], [0]>} : vector<2x8x8xbf16>, vector<2x8x8xbf16>, vector<2x8x8xf32> -> vector<2x8x8xf32>
    "tpu.trace_stop"() : () -> ()
    %95 = arith.truncf %94 : vector<2x8x8xf32> to vector<2x8x8xbf16>
    %c0_33 = arith.constant 0 : index
    %c0_34 = arith.constant 0 : index
    %c16 = arith.constant 16 : index
    %96 = vector.load %arg13[%c0_33, %c0_34, %c16] : memref<2x8x32xbf16, #tpu.memory_space<vmem>>, vector<2x8x8xbf16>
    tpu.vector_store %arg13[%c0_33, %c0_34, %c16], %95 {strides = array<i32>} : memref<2x8x32xbf16, #tpu.memory_space<vmem>>, vector<2x8x8xbf16>,
    %97 = vector.extract_strided_slice %36 {offsets = [0, 0, 24], sizes = [2, 8, 8], strides = [1, 1, 1]} : vector<2x8x32xbf16> to vector<2x8x8xbf16>
    %98 = vector.extract_strided_slice %39 {offsets = [0, 0, 24], sizes = [2, 8, 8], strides = [1, 1, 1]} : vector<2x8x32xbf16> to vector<2x8x8xbf16>
    %99 = vector.extract_strided_slice %42 {offsets = [0, 0, 24], sizes = [2, 8, 8], strides = [1, 1, 1]} : vector<2x8x32xbf16> to vector<2x8x8xbf16>
    "tpu.trace_start"() <{level = 10 : i32, message = "bqd,bkd->bqk"}> : () -> ()
    %cst_35 = arith.constant dense<0.000000e+00> : vector<2x8x8xf32>
    %100 = tpu.matmul %97, %98, %cst_35 {dimension_numbers = #tpu.dot_dimension_numbers<[2], [2], [1], [1], [0, 0, 0, 1, 1, 1], [0], [0]>} : vector<2x8x8xbf16>, vector<2x8x8xbf16>, vector<2x8x8xf32> -> vector<2x8x8xf32>
    "tpu.trace_stop"() : () -> ()
    %cst_36 = arith.constant dense<0xFF800000> : vector<2x8xf32>
    %101 = vector.multi_reduction <maximumf>, %100, %cst_36 [2] : vector<2x8x8xf32> to vector<2x8xf32>
    %102 = vector.shape_cast %101 : vector<2x8xf32> to vector<2x8x1xf32>
    %103 = vector.broadcast %102 : vector<2x8x1xf32> to vector<2x8x8xf32>
    %104 = arith.subf %100, %103 : vector<2x8x8xf32>
    %105 = math.exp %104 : vector<2x8x8xf32>
    %cst_37 = arith.constant dense<0.000000e+00> : vector<2x8xf32>
    %106 = vector.multi_reduction <add>, %105, %cst_37 [2] : vector<2x8x8xf32> to vector<2x8xf32>
    %107 = vector.shape_cast %106 : vector<2x8xf32> to vector<2x8x1xf32>
    %108 = tpu.reciprocal %107 {approx = true} : vector<2x8x1xf32> -> vector<2x8x1xf32>
    %109 = vector.broadcast %108 : vector<2x8x1xf32> to vector<2x8x8xf32>
    %110 = arith.mulf %105, %109 : vector<2x8x8xf32>
    %111 = arith.truncf %110 : vector<2x8x8xf32> to vector<2x8x8xbf16>
    "tpu.trace_start"() <{level = 10 : i32, message = "bqk,bkd->bqd"}> : () -> ()
    %cst_38 = arith.constant dense<0.000000e+00> : vector<2x8x8xf32>
    %112 = tpu.matmul %111, %99, %cst_38 {dimension_numbers = #tpu.dot_dimension_numbers<[2], [1], [1], [2], [0, 0, 0, 1, 1, 2], [0], [0]>} : vector<2x8x8xbf16>, vector<2x8x8xbf16>, vector<2x8x8xf32> -> vector<2x8x8xf32>
    "tpu.trace_stop"() : () -> ()
    %113 = arith.truncf %112 : vector<2x8x8xf32> to vector<2x8x8xbf16>
    %c0_39 = arith.constant 0 : index
    %c0_40 = arith.constant 0 : index
    %c24 = arith.constant 24 : index
    %114 = vector.load %arg13[%c0_39, %c0_40, %c24] : memref<2x8x32xbf16, #tpu.memory_space<vmem>>, vector<2x8x8xbf16>
    tpu.vector_store %arg13[%c0_39, %c0_40, %c24], %113 {strides = array<i32>} : memref<2x8x32xbf16, #tpu.memory_space<vmem>>, vector<2x8x8xbf16>,
    %c0_41 = arith.constant 0 : index
    %c0_42 = arith.constant 0 : index
    %c0_43 = arith.constant 0 : index
    %115 = vector.load %arg13[%c0_41, %c0_42, %c0_43] : memref<2x8x32xbf16, #tpu.memory_space<vmem>>, vector<2x8x32xbf16>
    %116 = vector.shape_cast %115 : vector<2x8x32xbf16> to vector<16x32xbf16>
    %c0_44 = arith.constant 0 : index
    %c0_45 = arith.constant 0 : index
    %117 = vector.load %arg6[%c0_44, %c0_45] : memref<32x32xbf16, #tpu.memory_space<vmem>>, vector<32x32xbf16>
    %cst_46 = arith.constant dense<0.000000e+00> : vector<16x32xf32>
    %118 = tpu.matmul %116, %117, %cst_46 {dimension_numbers = #tpu.dot_dimension_numbers<[1], [0], [0], [1], [0, 0, 1, 1], [], []>} : vector<16x32xbf16>, vector<32x32xbf16>, vector<16x32xf32> -> vector<16x32xf32>
    %c0_47 = arith.constant 0 : index
    %c0_48 = arith.constant 0 : index
    %119 = vector.load %arg7[%c0_47, %c0_48] : memref<1x32xf32, #tpu.memory_space<vmem>>, vector<1x32xf32>
    %120 = vector.broadcast %119 : vector<1x32xf32> to vector<16x32xf32>
    %121 = arith.addf %118, %120 : vector<16x32xf32>
    %122 = arith.addf %121, %1 : vector<16x32xf32>
    %cst_49 = arith.constant dense<0.000000e+00> : vector<16xf32>
    %123 = vector.multi_reduction <add>, %122, %cst_49 [1] : vector<16x32xf32> to vector<16xf32>
    %124 = vector.shape_cast %123 : vector<16xf32> to vector<16x1xf32>
    %cst_50 = arith.constant 3.200000e+01 : f32
    %125 = vector.broadcast %cst_50 : f32 to vector<16x1xf32>
    %126 = arith.divf %124, %125 : vector<16x1xf32>
    %127 = vector.broadcast %126 : vector<16x1xf32> to vector<16x32xf32>
    %128 = arith.subf %122, %127 : vector<16x32xf32>
    %129 = arith.mulf %128, %128 : vector<16x32xf32>
    %cst_51 = arith.constant dense<0.000000e+00> : vector<16xf32>
    %130 = vector.multi_reduction <add>, %129, %cst_51 [1] : vector<16x32xf32> to vector<16xf32>
    %131 = vector.shape_cast %130 : vector<16xf32> to vector<16x1xf32>
    %cst_52 = arith.constant 3.200000e+01 : f32
    %132 = vector.broadcast %cst_52 : f32 to vector<16x1xf32>
    %133 = arith.divf %131, %132 : vector<16x1xf32>
    %134 = vector.broadcast %126 : vector<16x1xf32> to vector<16x32xf32>
    %135 = arith.subf %122, %134 : vector<16x32xf32>
    %cst_53 = arith.constant 9.99999974E-6 : f32
    %136 = vector.broadcast %cst_53 : f32 to vector<16x1xf32>
    %137 = arith.addf %133, %136 : vector<16x1xf32>
    %138 = math.rsqrt %137 : vector<16x1xf32>
    %139 = vector.broadcast %138 : vector<16x1xf32> to vector<16x32xf32>
    %140 = arith.mulf %135, %139 : vector<16x32xf32>
    %141 = vector.broadcast %2 : vector<1x32xf32> to vector<16x32xf32>
    %142 = arith.mulf %140, %141 : vector<16x32xf32>
    %143 = vector.broadcast %3 : vector<1x32xf32> to vector<16x32xf32>
    %144 = arith.addf %142, %143 : vector<16x32xf32>
    %145 = arith.truncf %144 : vector<16x32xf32> to vector<16x32xbf16>
    %cst_54 = arith.constant 0.000000e+00 : f32
    %146 = vector.broadcast %cst_54 : f32 to vector<16x32xf32>
    %c0_55 = arith.constant 0 : index
    %c0_56 = arith.constant 0 : index
    %147 = vector.load %arg8[%c0_55, %c0_56] : memref<32x128xbf16, #tpu.memory_space<vmem>>, vector<32x128xbf16>
    %cst_57 = arith.constant dense<0.000000e+00> : vector<16x128xf32>
    %148 = tpu.matmul %145, %147, %cst_57 {dimension_numbers = #tpu.dot_dimension_numbers<[1], [0], [0], [1], [0, 0, 1, 1], [], []>} : vector<16x32xbf16>, vector<32x128xbf16>, vector<16x128xf32> -> vector<16x128xf32>
    %c0_58 = arith.constant 0 : index
    %c0_59 = arith.constant 0 : index
    %149 = vector.load %arg9[%c0_58, %c0_59] : memref<1x128xf32, #tpu.memory_space<vmem>>, vector<1x128xf32>
    %150 = vector.broadcast %149 : vector<1x128xf32> to vector<16x128xf32>
    %151 = arith.addf %148, %150 : vector<16x128xf32>
    %cst_60 = arith.constant 5.000000e-01 : f32
    %152 = vector.broadcast %cst_60 : f32 to vector<16x128xf32>
    %153 = arith.mulf %152, %151 : vector<16x128xf32>
    %cst_61 = arith.constant 0.707106769 : f32
    %154 = vector.broadcast %cst_61 : f32 to vector<16x128xf32>
    %155 = arith.mulf %151, %154 : vector<16x128xf32>
    %156 = math.erf %155 : vector<16x128xf32>
    %cst_62 = arith.constant 1.000000e+00 : f32
    %157 = vector.broadcast %cst_62 : f32 to vector<16x128xf32>
    %158 = arith.addf %157, %156 : vector<16x128xf32>
    %159 = arith.mulf %153, %158 : vector<16x128xf32>
    %160 = arith.truncf %159 : vector<16x128xf32> to vector<16x128xbf16>
    %c0_63 = arith.constant 0 : index
    %c0_64 = arith.constant 0 : index
    %161 = vector.load %arg10[%c0_63, %c0_64] : memref<128x32xbf16, #tpu.memory_space<vmem>>, vector<128x32xbf16>
    %cst_65 = arith.constant dense<0.000000e+00> : vector<16x32xf32>
    %162 = tpu.matmul %160, %161, %cst_65 {dimension_numbers = #tpu.dot_dimension_numbers<[1], [0], [0], [1], [0, 0, 1, 1], [], []>} : vector<16x128xbf16>, vector<128x32xbf16>, vector<16x32xf32> -> vector<16x32xf32>
    %163 = arith.addf %146, %162 : vector<16x32xf32>
    %c0_66 = arith.constant 0 : index
    %c0_67 = arith.constant 0 : index
    %164 = vector.load %arg11[%c0_66, %c0_67] : memref<1x32xf32, #tpu.memory_space<vmem>>, vector<1x32xf32>
    %165 = vector.broadcast %164 : vector<1x32xf32> to vector<16x32xf32>
    %166 = arith.addf %163, %165 : vector<16x32xf32>
    %167 = arith.addf %166, %122 : vector<16x32xf32>
    %168 = vector.shape_cast %167 : vector<16x32xf32> to vector<2x8x32xf32>
    %c0_68 = arith.constant 0 : index
    %c0_69 = arith.constant 0 : index
    %c0_70 = arith.constant 0 : index
    %169 = vector.load %arg12[%c0_68, %c0_69, %c0_70] : memref<2x8x32xf32, #tpu.memory_space<vmem>>, vector<2x8x32xf32>
    tpu.vector_store %arg12[%c0_68, %c0_69, %c0_70], %168 {strides = array<i32>} : memref<2x8x32xf32, #tpu.memory_space<vmem>>, vector<2x8x32xf32>,
    return
  }
  func.func @transform_0(%arg0: i32) -> (i32, i32, i32) {
    %c0_i32 = arith.constant 0 : i32
    %c0_i32_0 = arith.constant 0 : i32
    %c0_i32_1 = arith.constant 0 : i32
    return %arg0, %c0_i32, %c0_i32_0 : i32, i32, i32
  }
  func.func @transform_1(%arg0: i32) -> (i32, i32) {
    %c0_i32 = arith.constant 0 : i32
    %c0_i32_0 = arith.constant 0 : i32
    %c0_i32_1 = arith.constant 0 : i32
    return %c0_i32, %c0_i32_0 : i32, i32
  }
  func.func @transform_2(%arg0: i32) -> (i32, i32) {
    %c0_i32 = arith.constant 0 : i32
    %c0_i32_0 = arith.constant 0 : i32
    %c0_i32_1 = arith.constant 0 : i32
    return %c0_i32, %c0_i32_0 : i32, i32
  }
  func.func @transform_3(%arg0: i32) -> (i32, i32) {
    %c0_i32 = arith.constant 0 : i32
    %c0_i32_0 = arith.constant 0 : i32
    %c0_i32_1 = arith.constant 0 : i32
    return %c0_i32, %c0_i32_0 : i32, i32
  }
  func.func @transform_4(%arg0: i32) -> (i32, i32) {
    %c0_i32 = arith.constant 0 : i32
    %c0_i32_0 = arith.constant 0 : i32
    %c0_i32_1 = arith.constant 0 : i32
    return %c0_i32, %c0_i32_0 : i32, i32
  }
  func.func @transform_5(%arg0: i32) -> (i32, i32) {
    %c0_i32 = arith.constant 0 : i32
    %c0_i32_0 = arith.constant 0 : i32
    %c0_i32_1 = arith.constant 0 : i32
    return %c0_i32, %c0_i32_0 : i32, i32
  }
  func.func @transform_6(%arg0: i32) -> (i32, i32) {
    %c0_i32 = arith.constant 0 : i32
    %c0_i32_0 = arith.constant 0 : i32
    %c0_i32_1 = arith.constant 0 : i32
    return %c0_i32, %c0_i32_0 : i32, i32
  }
  func.func @transform_7(%arg0: i32) -> (i32, i32) {
    %c0_i32 = arith.constant 0 : i32
    %c0_i32_0 = arith.constant 0 : i32
    %c0_i32_1 = arith.constant 0 : i32
    return %c0_i32, %c0_i32_0 : i32, i32
  }
  func.func @transform_8(%arg0: i32) -> (i32, i32) {
    %c0_i32 = arith.constant 0 : i32
    %c0_i32_0 = arith.constant 0 : i32
    %c0_i32_1 = arith.constant 0 : i32
    return %c0_i32, %c0_i32_0 : i32, i32
  }
  func.func @transform_9(%arg0: i32) -> (i32, i32) {
    %c0_i32 = arith.constant 0 : i32
    %c0_i32_0 = arith.constant 0 : i32
    %c0_i32_1 = arith.constant 0 : i32
    return %c0_i32, %c0_i32_0 : i32, i32
  }
  func.func @transform_10(%arg0: i32) -> (i32, i32) {
    %c0_i32 = arith.constant 0 : i32
    %c0_i32_0 = arith.constant 0 : i32
    %c0_i32_1 = arith.constant 0 : i32
    return %c0_i32, %c0_i32_0 : i32, i32
  }
  func.func @transform_11(%arg0: i32) -> (i32, i32, i32) {
    %c0_i32 = arith.constant 0 : i32
    %c0_i32_0 = arith.constant 0 : i32
    %c0_i32_1 = arith.constant 0 : i32
    return %arg0, %c0_i32, %c0_i32_0 : i32, i32, i32
  }
}

</mosaic_0001>

<llo_original>
// kernel: tpu_custom_call.1
$region0: #{tpu_custom_call.1}
  #allocation0 [shape = 'u32[]', space=smem, size = 0x4, offset = 0x4, fixed_abs, tag = 'smem constant byte address 0x4 - core index']
  #allocation1 [shape = 'u32[72,128]{1,0:T(1,128)}', space=vmem, size = 0x9000, scoped, tag = 'internal scratch']
  #allocation2 [shape = 'bf16[2,8,32]{2,1,0:T(8,128)(2,1)}', space=vmem, size = 0x1000, scoped, tag = 'scratch operand']
  %s0 = inlined_call_operand.vmem [shape: f32[2,8,32], index: 0, kind: input, shape index: {}]
  %s1 = inlined_call_operand.vmem [shape: f32[1,32], index: 1, kind: input, shape index: {}]
  %s2 = inlined_call_operand.vmem [shape: f32[1,32], index: 2, kind: input, shape index: {}]
  %s3 = inlined_call_operand.vmem [shape: bf16[32,96], index: 3, kind: input, shape index: {}]
  %s4 = inlined_call_operand.vmem [shape: f32[1,96], index: 4, kind: input, shape index: {}]
  %s5 = inlined_call_operand.vmem [shape: bf16[32,32], index: 5, kind: input, shape index: {}]
  %s6 = inlined_call_operand.vmem [shape: f32[1,32], index: 6, kind: input, shape index: {}]
  %s7 = inlined_call_operand.vmem [shape: bf16[32,128], index: 7, kind: input, shape index: {}]
  %s8 = inlined_call_operand.vmem [shape: f32[1,128], index: 8, kind: input, shape index: {}]
  %s9 = inlined_call_operand.vmem [shape: bf16[128,32], index: 9, kind: input, shape index: {}]
  %s10 = inlined_call_operand.vmem [shape: f32[1,32], index: 10, kind: input, shape index: {}]
  %s11 = inlined_call_operand.hbm [shape: f32[2,8,32], index: 11, kind: output, shape index: {}]
  %s12 = sld [smem:[#allocation0]]
  $region54: #{tpu_custom_call.1} parent=0
    _
  %s14 = ssub.s32 1, %s12
  %s15 = scalar_select 0, %s14, %s12
  $region1: #{tpu_custom_call.1} parent=0
    #allocation3 [shape = 'u8[8192]{0}', space=vmem, size = 0x2000, scoped, tag = 'output window, operand 0, single buffered']
    #allocation4 [shape = 's32[1]{0}', space=sflag, size = 0x4, scoped, tag = 'scoped memory for tpu_custom_call.1']
    %16 = vsyncpa [#allocation4], 0
    // Predicated region
    $region2: #{tpu_custom_call.1} parent=1 // pred_check
      _
    $region3: #{tpu_custom_call.1} parent=1 // pred_check_branch
      %18 = sbr.rel (0) target = $region5
    $region4: #{tpu_custom_call.1} parent=1 // pred_region
      _
    $region5: #{tpu_custom_call.1} parent=1 // pred_fallthru
      _
    // Predicated region
    $region6: #{tpu_custom_call.1} parent=1 // pred_check
      _
    $region7: #{tpu_custom_call.1} parent=1 // pred_check_branch
      %20 = sbr.rel (0) target = $region9
    $region8: #{tpu_custom_call.1} parent=1 // pred_region
      _
    $region9: #{tpu_custom_call.1} parent=1 // pred_fallthru
      _
    // Predicated region
    $region10: #{tpu_custom_call.1} parent=1 // pred_check
      _
    $region11: #{tpu_custom_call.1} parent=1 // pred_check_branch
      %22 = sbr.rel (0) target = $region13
    $region12: #{tpu_custom_call.1} parent=1 // pred_region
      _
    $region13: #{tpu_custom_call.1} parent=1 // pred_fallthru
      _
    // Predicated region
    $region14: #{tpu_custom_call.1} parent=1 // pred_check
      _
    $region15: #{tpu_custom_call.1} parent=1 // pred_check_branch
      %24 = sbr.rel (0) target = $region17
    $region16: #{tpu_custom_call.1} parent=1 // pred_region
      _
    $region17: #{tpu_custom_call.1} parent=1 // pred_fallthru
      _
    // Predicated region
    $region18: #{tpu_custom_call.1} parent=1 // pred_check
      _
    $region19: #{tpu_custom_call.1} parent=1 // pred_check_branch
      %26 = sbr.rel (0) target = $region21
    $region20: #{tpu_custom_call.1} parent=1 // pred_region
      _
    $region21: #{tpu_custom_call.1} parent=1 // pred_fallthru
      _
    // Predicated region
    $region22: #{tpu_custom_call.1} parent=1 // pred_check
      _
    $region23: #{tpu_custom_call.1} parent=1 // pred_check_branch
      %28 = sbr.rel (0) target = $region25
    $region24: #{tpu_custom_call.1} parent=1 // pred_region
      _
    $region25: #{tpu_custom_call.1} parent=1 // pred_fallthru
      _
    // Predicated region
    $region26: #{tpu_custom_call.1} parent=1 // pred_check
      _
    $region27: #{tpu_custom_call.1} parent=1 // pred_check_branch
      %30 = sbr.rel (0) target = $region29
    $region28: #{tpu_custom_call.1} parent=1 // pred_region
      _
    $region29: #{tpu_custom_call.1} parent=1 // pred_fallthru
      _
    // Predicated region
    $region30: #{tpu_custom_call.1} parent=1 // pred_check
      _
    $region31: #{tpu_custom_call.1} parent=1 // pred_check_branch
      %32 = sbr.rel (0) target = $region33
    $region32: #{tpu_custom_call.1} parent=1 // pred_region
      _
    $region33: #{tpu_custom_call.1} parent=1 // pred_fallthru
      _
    // Predicated region
    $region34: #{tpu_custom_call.1} parent=1 // pred_check
      _
    $region35: #{tpu_custom_call.1} parent=1 // pred_check_branch
      %34 = sbr.rel (0) target = $region37
    $region36: #{tpu_custom_call.1} parent=1 // pred_region
      _
    $region37: #{tpu_custom_call.1} parent=1 // pred_fallthru
      _
    // Predicated region
    $region38: #{tpu_custom_call.1} parent=1 // pred_check
      _
    $region39: #{tpu_custom_call.1} parent=1 // pred_check_branch
      %36 = sbr.rel (0) target = $region41
    $region40: #{tpu_custom_call.1} parent=1 // pred_region
      _
    $region41: #{tpu_custom_call.1} parent=1 // pred_fallthru
      _
    // Predicated region
    $region42: #{tpu_custom_call.1} parent=1 // pred_check
      _
    $region43: #{tpu_custom_call.1} parent=1 // pred_check_branch
      %38 = sbr.rel (0) target = $region45
    $region44: #{tpu_custom_call.1} parent=1 // pred_region
      _
    $region45: #{tpu_custom_call.1} parent=1 // pred_fallthru
      _
    %v40 = vld [vmem:[%s0] sm:$0xff]
    %v41 = vld [vmem:[%s0 + $0x8] sm:$0xff]
    %v42 = vld [vmem:[%s1] sm:$0x1]
    %v43 = vld [vmem:[%s2] sm:$0x1]
    %vm44 = vcmask 261120
    %v45 = vsel %vm44, %v40, 0.0
    %46 = vadd.xlane.f32.xlu0 %v45
    %v47 = vpop.xlane.xlu0 %46
    %v48 = vsel %vm44, %v41, 0.0
    %49 = vadd.xlane.f32.xlu0 %v48
    %v50 = vpop.xlane.xlu0 %49
    %v51 = vrcp.pop 32.0
    %v52 = vmul.f32 32.0, %v51
    %v53 = vsub.f32 1.0, %v52
    %v54 = vmul.f32 %v51, %v53
    %v55 = vadd.f32 %v51, %v54
    %vm56 = vweird.f32 %v51
    %v57 = vsel %vm56, %v51, %v55
    %v58 = vmul.f32 %v47, %v57
    %v59 = vmul.f32 %v50, %v57
    %v60 = vsub.f32 %v40, %v58
    %v61 = vsub.f32 %v41, %v59
    %v62 = vmul.f32 %v60, %v60
    %v63 = vmul.f32 %v61, %v61
    %v64 = vsel %vm44, %v62, 0.0
    %65 = vadd.xlane.f32.xlu0 %v64
    %v66 = vpop.xlane.xlu0 %65
    %v67 = vsel %vm44, %v63, 0.0
    %68 = vadd.xlane.f32.xlu0 %v67
    %v69 = vpop.xlane.xlu0 %68
    %v70 = vmul.f32 %v66, %v57
    %v71 = vmul.f32 %v69, %v57
    %v72 = vadd.f32 %v70, 1e-05
    %v73 = vadd.f32 %v71, 1e-05
    %v74 = vrsqrt.pop %v72
    %v75 = vmul.f32 %v74, %v72
    %v76 = vmul.f32 %v75, %v74
    %v77 = vmul.f32 0.5, %v76
    %v78 = vsub.f32 1.5, %v77
    %v79 = vmul.f32 %v74, %v78
    %vm80 = vweird.f32 %v72
    %vm81 = vweird.f32 %v74
    %vm82 = vmor %vm80, %vm81
    %v83 = vsel %vm82, %v74, %v79
    %v84 = vrsqrt.pop %v73
    %v85 = vmul.f32 %v84, %v73
    %v86 = vmul.f32 %v85, %v84
    %v87 = vmul.f32 0.5, %v86
    %v88 = vsub.f32 1.5, %v87
    %v89 = vmul.f32 %v84, %v88
    %vm90 = vweird.f32 %v73
    %vm91 = vweird.f32 %v84
    %vm92 = vmor %vm90, %vm91
    %v93 = vsel %vm92, %v84, %v89
    %v94 = vmul.f32 %v60, %v83
    %v95 = vmul.f32 %v61, %v93
    %v97 = vperm.slane %v42, 0
    %v99 = vmul.f32 %v94, %v97
    %v100 = vmul.f32 %v95, %v97
    %v102 = vperm.slane %v43, 0
    %v104 = vadd.f32 %v99, %v102
    %v105 = vadd.f32 %v100, %v102
    %v106 = vpack.c.bf16 %v105, %v104
    %v107 = vld [vmem:[%s3] sm:$0xf]
    %v108 = vld [vmem:[%s3 + $0x4] sm:$0xf]
    %v109 = vld [vmem:[%s3 + $0x8] sm:$0xf]
    %v110 = vld [vmem:[%s3 + $0xc] sm:$0xf]
    %v111 = vld [vmem:[%s4] sm:$0x1]
    %v113 = vperm.slane %v111, 0
    %v119 = vunpack.c.l.b16 %v107
    %v120 = vunpack.c.l.b16 %v108
    %v121 = vunpack.c.l.b16 %v109
    %v122 = vunpack.c.l.b16 %v110
    %v123 = vpack.c.b16 %v120, %v119
    %v124 = vpack.c.b16 %v122, %v121
    %v128 = vsel %vm44, %v106, 0
    %130 = vmatpush.bf16.msra.mxu0 0
    %131 = vmatpush.bf16.msra.mxu0 0
    %132 = vmatpush.bf16.msra.mxu0 0
    %133 = vmatpush.bf16.msra.mxu0 0
    %134 = vmatpush.bf16.msra.mxu0 0
    %135 = vmatpush.bf16.msra.mxu0 0
    %136 = vmatpush.bf16.msra.mxu0 %v124
    %137 = vmatpush.bf16.msra.mxu0 %v123
    %138 = vmatmul.bf16.gmra.mxu0 %v128
    %v139 = vpop.f32.mrf.mxu0
    %v140 = vadd.f32 %v113, %v139
    %v141 = vpop.f32.mrf.mxu0
    %v142 = vadd.f32 %v113, %v141
    %143 = vdwg.mxu0
    %v144 = vmul.f32 %v140, 0.35355338
    %v145 = vmul.f32 %v142, 0.35355338
    %v146 = vpack.c.bf16 %v144, %v144
    %v147 = vpack.c.bf16 %v145, %v145
    %v148 = vpack.c.bf16 %v140, %v140
    %v149 = vpack.c.bf16 %v142, %v142
    %v151 = vunpack.c.l.b16 %v148
    %v152 = vpack.c.b16 %v151, %v151
    %153 = vrot.lane.b32.xlu0 %v152, 96
    %v154 = vpop.permute.xlu0 %153
    %vm155 = vcmask 64512
    %v157 = vsel %vm155, %v146, 0
    %v160 = vsel %vm155, %v154, 0
    %162 = vmatpush.bf16.xpose.msra.mxu0 0
    %163 = vmatpush.bf16.xpose.msra.mxu0 0
    %164 = vmatpush.bf16.xpose.msra.mxu0 0
    %165 = vmatpush.bf16.xpose.msra.mxu0 0
    %166 = vmatpush.bf16.xpose.msra.mxu0 0
    %167 = vmatpush.bf16.xpose.msra.mxu0 0
    %168 = vmatpush.bf16.xpose.msra.mxu0 0
    %169 = vmatpush.bf16.xpose.msra.mxu0 %v160
    %170 = vmatmul.bf16.gmra.mxu0 %v157
    %v171 = vpop.f32.mrf.mxu0
    %v172 = vadd.f32 0.0, %v171
    %v173 = vpop.f32.mrf.mxu0
    %174 = vdwg.mxu0
    %v176 = vunpack.c.l.b16 %v149
    %v177 = vpack.c.b16 %v176, %v176
    %178 = vrot.lane.b32.xlu0 %v177, 96
    %v179 = vpop.permute.xlu0 %178
    %v181 = vsel %vm155, %v147, 0
    %v184 = vsel %vm155, %v179, 0
    %186 = vmatpush.bf16.xpose.msra.mxu0 0
    %187 = vmatpush.bf16.xpose.msra.mxu0 0
    %188 = vmatpush.bf16.xpose.msra.mxu0 0
    %189 = vmatpush.bf16.xpose.msra.mxu0 0
    %190 = vmatpush.bf16.xpose.msra.mxu0 0
    %191 = vmatpush.bf16.xpose.msra.mxu0 0
    %192 = vmatpush.bf16.xpose.msra.mxu0 0
    %193 = vmatpush.bf16.xpose.msra.mxu0 %v184
    %194 = vmatmul.bf16.gmra.mxu0 %v181
    %v195 = vpop.f32.mrf.mxu0
    %v196 = vadd.f32 0.0, %v195
    %v197 = vpop.f32.mrf.mxu0
    %198 = vdwg.mxu0
    %v199 = vsel %vm155, %v172, -inf
    %200 = vmax.xlane.f32.xlu0 %v199
    %v201 = vpop.xlane.xlu0 %200
    %v202 = vsel %vm155, %v196, -inf
    %203 = vmax.xlane.f32.xlu0 %v202
    %v204 = vpop.xlane.xlu0 %203
    %v205 = vsub.f32 %v172, %v201
    %v206 = vsub.f32 %v196, %v204
    %v207 = vmul.f32 %v205, 1.442695
    %v208 = vpow.pop %v207
    %v209 = vmul.f32 %v206, 1.442695
    %v210 = vpow.pop %v209
    %v211 = vsel %vm155, %v208, 0.0
    %212 = vadd.xlane.f32.xlu0 %v211
    %v213 = vpop.xlane.xlu0 %212
    %v214 = vsel %vm155, %v210, 0.0
    %215 = vadd.xlane.f32.xlu0 %v214
    %v216 = vpop.xlane.xlu0 %215
    %v217 = vrcp.pop %v213
    %v218 = vrcp.pop %v216
    %v219 = vmul.f32 %v208, %v217
    %v220 = vmul.f32 %v210, %v218
    %v221 = vpack.c.bf16 %v219, %v219
    %v222 = vpack.c.bf16 %v220, %v220
    %223 = vrot.lane.b32.xlu0 %v152, 64
    %v224 = vpop.permute.xlu0 %223
    %v226 = vsel %vm155, %v221, 0
    %vm228 = vcmask 1043456
    %v230 = vsel %vm228, %v224, 0
    %232 = vmatpush.bf16.msra.mxu0 0
    %233 = vmatpush.bf16.msra.mxu0 0
    %234 = vmatpush.bf16.msra.mxu0 0
    %235 = vmatpush.bf16.msra.mxu0 0
    %236 = vmatpush.bf16.msra.mxu0 0
    %237 = vmatpush.bf16.msra.mxu0 0
    %238 = vmatpush.bf16.msra.mxu0 0
    %239 = vmatpush.bf16.msra.mxu0 %v230
    %240 = vmatmul.bf16.gmra.mxu0 %v226
    %v241 = vpop.f32.mrf.mxu0
    %v242 = vadd.f32 0.0, %v241
    %v243 = vpop.f32.mrf.mxu0
    %244 = vdwg.mxu0
    %245 = vrot.lane.b32.xlu0 %v177, 64
    %v246 = vpop.permute.xlu0 %245
    %v248 = vsel %vm155, %v222, 0
    %v251 = vsel %vm228, %v246, 0
    %253 = vmatpush.bf16.msra.mxu0 0
    %254 = vmatpush.bf16.msra.mxu0 0
    %255 = vmatpush.bf16.msra.mxu0 0
    %256 = vmatpush.bf16.msra.mxu0 0
    %257 = vmatpush.bf16.msra.mxu0 0
    %258 = vmatpush.bf16.msra.mxu0 0
    %259 = vmatpush.bf16.msra.mxu0 0
    %260 = vmatpush.bf16.msra.mxu0 %v251
    %261 = vmatmul.bf16.gmra.mxu0 %v248
    %v262 = vpop.f32.mrf.mxu0
    %v263 = vadd.f32 0.0, %v262
    %v264 = vpop.f32.mrf.mxu0
    %265 = vdwg.mxu0
    %v266 = vpack.c.bf16 %v242, %v242
    %v267 = vpack.c.bf16 %v263, %v263
    %vm268 = vcmask 60416
    %269 = vst.msk [vmem:[#allocation2] sm:$0xf] %vm268, %v266
    %270 = vst.msk [vmem:[#allocation2 + $0x4] sm:$0xf] %vm268, %v267
    %v272 = vunpack.c.l.b16 %v146
    %v273 = vpack.c.b16 %v272, %v272
    %274 = vrot.lane.b32.xlu0 %v273, 120
    %v275 = vpop.permute.xlu0 %274
    %276 = vrot.lane.b32.xlu0 %v152, 88
    %v277 = vpop.permute.xlu0 %276
    %v279 = vsel %vm155, %v275, 0
    %v282 = vsel %vm155, %v277, 0
    %284 = vmatpush.bf16.xpose.msra.mxu0 0
    %285 = vmatpush.bf16.xpose.msra.mxu0 0
    %286 = vmatpush.bf16.xpose.msra.mxu0 0
    %287 = vmatpush.bf16.xpose.msra.mxu0 0
    %288 = vmatpush.bf16.xpose.msra.mxu0 0
    %289 = vmatpush.bf16.xpose.msra.mxu0 0
    %290 = vmatpush.bf16.xpose.msra.mxu0 0
    %291 = vmatpush.bf16.xpose.msra.mxu0 %v282
    %292 = vmatmul.bf16.gmra.mxu0 %v279
    %v293 = vpop.f32.mrf.mxu0
    %v294 = vadd.f32 0.0, %v293
    %v295 = vpop.f32.mrf.mxu0
    %296 = vdwg.mxu0
    %v298 = vunpack.c.l.b16 %v147
    %v299 = vpack.c.b16 %v298, %v298
    %300 = vrot.lane.b32.xlu0 %v299, 120
    %v301 = vpop.permute.xlu0 %300
    %302 = vrot.lane.b32.xlu0 %v177, 88
    %v303 = vpop.permute.xlu0 %302
    %v305 = vsel %vm155, %v301, 0
    %v308 = vsel %vm155, %v303, 0
    %310 = vmatpush.bf16.xpose.msra.mxu0 0
    %311 = vmatpush.bf16.xpose.msra.mxu0 0
    %312 = vmatpush.bf16.xpose.msra.mxu0 0
    %313 = vmatpush.bf16.xpose.msra.mxu0 0
    %314 = vmatpush.bf16.xpose.msra.mxu0 0
    %315 = vmatpush.bf16.xpose.msra.mxu0 0
    %316 = vmatpush.bf16.xpose.msra.mxu0 0
    %317 = vmatpush.bf16.xpose.msra.mxu0 %v308
    %318 = vmatmul.bf16.gmra.mxu0 %v305
    %v319 = vpop.f32.mrf.mxu0
    %v320 = vadd.f32 0.0, %v319
    %v321 = vpop.f32.mrf.mxu0
    %322 = vdwg.mxu0
    %v323 = vsel %vm155, %v294, -inf
    %324 = vmax.xlane.f32.xlu0 %v323
    %v325 = vpop.xlane.xlu0 %324
    %v326 = vsel %vm155, %v320, -inf
    %327 = vmax.xlane.f32.xlu0 %v326
    %v328 = vpop.xlane.xlu0 %327
    %v329 = vsub.f32 %v294, %v325
    %v330 = vsub.f32 %v320, %v328
    %v331 = vmul.f32 %v329, 1.442695
    %v332 = vpow.pop %v331
    %v333 = vmul.f32 %v330, 1.442695
    %v334 = vpow.pop %v333
    %v335 = vsel %vm155, %v332, 0.0
    %336 = vadd.xlane.f32.xlu0 %v335
    %v337 = vpop.xlane.xlu0 %336
    %v338 = vsel %vm155, %v334, 0.0
    %339 = vadd.xlane.f32.xlu0 %v338
    %v340 = vpop.xlane.xlu0 %339
    %v341 = vrcp.pop %v337
    %v342 = vrcp.pop %v340
    %v343 = vmul.f32 %v332, %v341
    %v344 = vmul.f32 %v334, %v342
    %v345 = vpack.c.bf16 %v343, %v343
    %v346 = vpack.c.bf16 %v344, %v344
    %347 = vrot.lane.b32.xlu0 %v152, 56
    %v348 = vpop.permute.xlu0 %347
    %v350 = vsel %vm155, %v345, 0
    %v353 = vsel %vm228, %v348, 0
    %355 = vmatpush.bf16.msra.mxu0 0
    %356 = vmatpush.bf16.msra.mxu0 0
    %357 = vmatpush.bf16.msra.mxu0 0
    %358 = vmatpush.bf16.msra.mxu0 0
    %359 = vmatpush.bf16.msra.mxu0 0
    %360 = vmatpush.bf16.msra.mxu0 0
    %361 = vmatpush.bf16.msra.mxu0 0
    %362 = vmatpush.bf16.msra.mxu0 %v353
    %363 = vmatmul.bf16.gmra.mxu0 %v350
    %v364 = vpop.f32.mrf.mxu0
    %v365 = vadd.f32 0.0, %v364
    %v366 = vpop.f32.mrf.mxu0
    %367 = vdwg.mxu0
    %368 = vrot.lane.b32.xlu0 %v177, 56
    %v369 = vpop.permute.xlu0 %368
    %v371 = vsel %vm155, %v346, 0
    %v374 = vsel %vm228, %v369, 0
    %376 = vmatpush.bf16.msra.mxu0 0
    %377 = vmatpush.bf16.msra.mxu0 0
    %378 = vmatpush.bf16.msra.mxu0 0
    %379 = vmatpush.bf16.msra.mxu0 0
    %380 = vmatpush.bf16.msra.mxu0 0
    %381 = vmatpush.bf16.msra.mxu0 0
    %382 = vmatpush.bf16.msra.mxu0 0
    %383 = vmatpush.bf16.msra.mxu0 %v374
    %384 = vmatmul.bf16.gmra.mxu0 %v371
    %v385 = vpop.f32.mrf.mxu0
    %v386 = vadd.f32 0.0, %v385
    %v387 = vpop.f32.mrf.mxu0
    %388 = vdwg.mxu0
    %v389 = vpack.c.bf16 %v365, %v365
    %v390 = vpack.c.bf16 %v386, %v386
    %393 = vrot.lane.b32.xlu0 %v389, 8
    %v394 = vpop.permute.xlu0 %393
    %395 = vrot.lane.b32.xlu0 %v390, 8
    %v396 = vpop.permute.xlu0 %395
    %vm399 = vcmask 126016
    %400 = vst.msk [vmem:[#allocation2] sm:$0xf] %vm399, %v394
    %401 = vst.msk [vmem:[#allocation2 + $0x4] sm:$0xf] %vm399, %v396
    %402 = vrot.lane.b32.xlu0 %v273, 112
    %v403 = vpop.permute.xlu0 %402
    %404 = vrot.lane.b32.xlu0 %v152, 80
    %v405 = vpop.permute.xlu0 %404
    %v407 = vsel %vm155, %v403, 0
    %v410 = vsel %vm155, %v405, 0
    %412 = vmatpush.bf16.xpose.msra.mxu0 0
    %413 = vmatpush.bf16.xpose.msra.mxu0 0
    %414 = vmatpush.bf16.xpose.msra.mxu0 0
    %415 = vmatpush.bf16.xpose.msra.mxu0 0
    %416 = vmatpush.bf16.xpose.msra.mxu0 0
    %417 = vmatpush.bf16.xpose.msra.mxu0 0
    %418 = vmatpush.bf16.xpose.msra.mxu0 0
    %419 = vmatpush.bf16.xpose.msra.mxu0 %v410
    %420 = vmatmul.bf16.gmra.mxu0 %v407
    %v421 = vpop.f32.mrf.mxu0
    %v422 = vadd.f32 0.0, %v421
    %v423 = vpop.f32.mrf.mxu0
    %424 = vdwg.mxu0
    %425 = vrot.lane.b32.xlu0 %v299, 112
    %v426 = vpop.permute.xlu0 %425
    %427 = vrot.lane.b32.xlu0 %v177, 80
    %v428 = vpop.permute.xlu0 %427
    %v430 = vsel %vm155, %v426, 0
    %v433 = vsel %vm155, %v428, 0
    %435 = vmatpush.bf16.xpose.msra.mxu0 0
    %436 = vmatpush.bf16.xpose.msra.mxu0 0
    %437 = vmatpush.bf16.xpose.msra.mxu0 0
    %438 = vmatpush.bf16.xpose.msra.mxu0 0
    %439 = vmatpush.bf16.xpose.msra.mxu0 0
    %440 = vmatpush.bf16.xpose.msra.mxu0 0
    %441 = vmatpush.bf16.xpose.msra.mxu0 0
    %442 = vmatpush.bf16.xpose.msra.mxu0 %v433
    %443 = vmatmul.bf16.gmra.mxu0 %v430
    %v444 = vpop.f32.mrf.mxu0
    %v445 = vadd.f32 0.0, %v444
    %v446 = vpop.f32.mrf.mxu0
    %447 = vdwg.mxu0
    %v448 = vsel %vm155, %v422, -inf
    %449 = vmax.xlane.f32.xlu0 %v448
    %v450 = vpop.xlane.xlu0 %449
    %v451 = vsel %vm155, %v445, -inf
    %452 = vmax.xlane.f32.xlu0 %v451
    %v453 = vpop.xlane.xlu0 %452
    %v454 = vsub.f32 %v422, %v450
    %v455 = vsub.f32 %v445, %v453
    %v456 = vmul.f32 %v454, 1.442695
    %v457 = vpow.pop %v456
    %v458 = vmul.f32 %v455, 1.442695
    %v459 = vpow.pop %v458
    %v460 = vsel %vm155, %v457, 0.0
    %461 = vadd.xlane.f32.xlu0 %v460
    %v462 = vpop.xlane.xlu0 %461
    %v463 = vsel %vm155, %v459, 0.0
    %464 = vadd.xlane.f32.xlu0 %v463
    %v465 = vpop.xlane.xlu0 %464
    %v466 = vrcp.pop %v462
    %v467 = vrcp.pop %v465
    %v468 = vmul.f32 %v457, %v466
    %v469 = vmul.f32 %v459, %v467
    %v470 = vpack.c.bf16 %v468, %v468
    %v471 = vpack.c.bf16 %v469, %v469
    %472 = vrot.lane.b32.xlu0 %v152, 48
    %v473 = vpop.permute.xlu0 %472
    %v475 = vsel %vm155, %v470, 0
    %v478 = vsel %vm228, %v473, 0
    %480 = vmatpush.bf16.msra.mxu0 0
    %481 = vmatpush.bf16.msra.mxu0 0
    %482 = vmatpush.bf16.msra.mxu0 0
    %483 = vmatpush.bf16.msra.mxu0 0
    %484 = vmatpush.bf16.msra.mxu0 0
    %485 = vmatpush.bf16.msra.mxu0 0
    %486 = vmatpush.bf16.msra.mxu0 0
    %487 = vmatpush.bf16.msra.mxu0 %v478
    %488 = vmatmul.bf16.gmra.mxu0 %v475
    %v489 = vpop.f32.mrf.mxu0
    %v490 = vadd.f32 0.0, %v489
    %v491 = vpop.f32.mrf.mxu0
    %492 = vdwg.mxu0
    %493 = vrot.lane.b32.xlu0 %v177, 48
    %v494 = vpop.permute.xlu0 %493
    %v496 = vsel %vm155, %v471, 0
    %v499 = vsel %vm228, %v494, 0
    %501 = vmatpush.bf16.msra.mxu0 0
    %502 = vmatpush.bf16.msra.mxu0 0
    %503 = vmatpush.bf16.msra.mxu0 0
    %504 = vmatpush.bf16.msra.mxu0 0
    %505 = vmatpush.bf16.msra.mxu0 0
    %506 = vmatpush.bf16.msra.mxu0 0
    %507 = vmatpush.bf16.msra.mxu0 0
    %508 = vmatpush.bf16.msra.mxu0 %v499
    %509 = vmatmul.bf16.gmra.mxu0 %v496
    %v510 = vpop.f32.mrf.mxu0
    %v511 = vadd.f32 0.0, %v510
    %v512 = vpop.f32.mrf.mxu0
    %513 = vdwg.mxu0
    %v514 = vpack.c.bf16 %v490, %v490
    %v515 = vpack.c.bf16 %v511, %v511
    %518 = vrot.lane.b32.xlu0 %v514, 16
    %v519 = vpop.permute.xlu0 %518
    %520 = vrot.lane.b32.xlu0 %v515, 16
    %v521 = vpop.permute.xlu0 %520
    %vm524 = vcmask 191616
    %525 = vst.msk [vmem:[#allocation2] sm:$0xf] %vm524, %v519
    %526 = vst.msk [vmem:[#allocation2 + $0x4] sm:$0xf] %vm524, %v521
    %527 = vrot.lane.b32.xlu0 %v273, 104
    %v528 = vpop.permute.xlu0 %527
    %529 = vrot.lane.b32.xlu0 %v152, 72
    %v530 = vpop.permute.xlu0 %529
    %v532 = vsel %vm155, %v528, 0
    %v535 = vsel %vm155, %v530, 0
    %537 = vmatpush.bf16.xpose.msra.mxu0 0
    %538 = vmatpush.bf16.xpose.msra.mxu0 0
    %539 = vmatpush.bf16.xpose.msra.mxu0 0
    %540 = vmatpush.bf16.xpose.msra.mxu0 0
    %541 = vmatpush.bf16.xpose.msra.mxu0 0
    %542 = vmatpush.bf16.xpose.msra.mxu0 0
    %543 = vmatpush.bf16.xpose.msra.mxu0 0
    %544 = vmatpush.bf16.xpose.msra.mxu0 %v535
    %545 = vmatmul.bf16.gmra.mxu0 %v532
    %v546 = vpop.f32.mrf.mxu0
    %v547 = vadd.f32 0.0, %v546
    %v548 = vpop.f32.mrf.mxu0
    %549 = vdwg.mxu0
    %550 = vrot.lane.b32.xlu0 %v299, 104
    %v551 = vpop.permute.xlu0 %550
    %552 = vrot.lane.b32.xlu0 %v177, 72
    %v553 = vpop.permute.xlu0 %552
    %v555 = vsel %vm155, %v551, 0
    %v558 = vsel %vm155, %v553, 0
    %560 = vmatpush.bf16.xpose.msra.mxu0 0
    %561 = vmatpush.bf16.xpose.msra.mxu0 0
    %562 = vmatpush.bf16.xpose.msra.mxu0 0
    %563 = vmatpush.bf16.xpose.msra.mxu0 0
    %564 = vmatpush.bf16.xpose.msra.mxu0 0
    %565 = vmatpush.bf16.xpose.msra.mxu0 0
    %566 = vmatpush.bf16.xpose.msra.mxu0 0
    %567 = vmatpush.bf16.xpose.msra.mxu0 %v558
    %568 = vmatmul.bf16.gmra.mxu0 %v555
    %v569 = vpop.f32.mrf.mxu0
    %v570 = vadd.f32 0.0, %v569
    %v571 = vpop.f32.mrf.mxu0
    %572 = vdwg.mxu0
    %v573 = vsel %vm155, %v547, -inf
    %574 = vmax.xlane.f32.xlu0 %v573
    %v575 = vpop.xlane.xlu0 %574
    %v576 = vsel %vm155, %v570, -inf
    %577 = vmax.xlane.f32.xlu0 %v576
    %v578 = vpop.xlane.xlu0 %577
    %v579 = vsub.f32 %v547, %v575
    %v580 = vsub.f32 %v570, %v578
    %v581 = vmul.f32 %v579, 1.442695
    %v582 = vpow.pop %v581
    %v583 = vmul.f32 %v580, 1.442695
    %v584 = vpow.pop %v583
    %v585 = vsel %vm155, %v582, 0.0
    %586 = vadd.xlane.f32.xlu0 %v585
    %v587 = vpop.xlane.xlu0 %586
    %v588 = vsel %vm155, %v584, 0.0
    %589 = vadd.xlane.f32.xlu0 %v588
    %v590 = vpop.xlane.xlu0 %589
    %v591 = vrcp.pop %v587
    %v592 = vrcp.pop %v590
    %v593 = vmul.f32 %v582, %v591
    %v594 = vmul.f32 %v584, %v592
    %v595 = vpack.c.bf16 %v593, %v593
    %v596 = vpack.c.bf16 %v594, %v594
    %597 = vrot.lane.b32.xlu0 %v152, 40
    %v598 = vpop.permute.xlu0 %597
    %v600 = vsel %vm155, %v595, 0
    %v603 = vsel %vm228, %v598, 0
    %605 = vmatpush.bf16.msra.mxu0 0
    %606 = vmatpush.bf16.msra.mxu0 0
    %607 = vmatpush.bf16.msra.mxu0 0
    %608 = vmatpush.bf16.msra.mxu0 0
    %609 = vmatpush.bf16.msra.mxu0 0
    %610 = vmatpush.bf16.msra.mxu0 0
    %611 = vmatpush.bf16.msra.mxu0 0
    %612 = vmatpush.bf16.msra.mxu0 %v603
    %613 = vmatmul.bf16.gmra.mxu0 %v600
    %v614 = vpop.f32.mrf.mxu0
    %v615 = vadd.f32 0.0, %v614
    %v616 = vpop.f32.mrf.mxu0
    %617 = vdwg.mxu0
    %618 = vrot.lane.b32.xlu0 %v177, 40
    %v619 = vpop.permute.xlu0 %618
    %v621 = vsel %vm155, %v596, 0
    %v624 = vsel %vm228, %v619, 0
    %626 = vmatpush.bf16.msra.mxu0 0
    %627 = vmatpush.bf16.msra.mxu0 0
    %628 = vmatpush.bf16.msra.mxu0 0
    %629 = vmatpush.bf16.msra.mxu0 0
    %630 = vmatpush.bf16.msra.mxu0 0
    %631 = vmatpush.bf16.msra.mxu0 0
    %632 = vmatpush.bf16.msra.mxu0 0
    %633 = vmatpush.bf16.msra.mxu0 %v624
    %634 = vmatmul.bf16.gmra.mxu0 %v621
    %v635 = vpop.f32.mrf.mxu0
    %v636 = vadd.f32 0.0, %v635
    %v637 = vpop.f32.mrf.mxu0
    %638 = vdwg.mxu0
    %v639 = vpack.c.bf16 %v615, %v615
    %v640 = vpack.c.bf16 %v636, %v636
    %643 = vrot.lane.b32.xlu0 %v639, 24
    %v644 = vpop.permute.xlu0 %643
    %645 = vrot.lane.b32.xlu0 %v640, 24
    %v646 = vpop.permute.xlu0 %645
    %vm649 = vcmask 257216
    %650 = vst.msk [vmem:[#allocation2] sm:$0xf] %vm649, %v644
    %651 = vst.msk [vmem:[#allocation2 + $0x4] sm:$0xf] %vm649, %v646
    %v652 = vld [vmem:[#allocation2] sm:$0xf]
    %v653 = vld [vmem:[#allocation2 + $0x4] sm:$0xf]
    %v654 = vld [vmem:[%s5] sm:$0xf]
    %v655 = vld [vmem:[%s5 + $0x4] sm:$0xf]
    %v656 = vld [vmem:[%s5 + $0x8] sm:$0xf]
    %v657 = vld [vmem:[%s5 + $0xc] sm:$0xf]
    %v658 = vld [vmem:[%s6] sm:$0x1]
    %v660 = vperm.slane %v658, 0
    %v664 = vunpack.c.l.b16 %v652
    %v665 = vunpack.c.l.b16 %v653
    %v666 = vpack.c.b16 %v665, %v664
    %v671 = vunpack.c.l.b16 %v654
    %v672 = vunpack.c.l.b16 %v655
    %v673 = vunpack.c.l.b16 %v656
    %v674 = vunpack.c.l.b16 %v657
    %v675 = vpack.c.b16 %v672, %v671
    %v676 = vpack.c.b16 %v674, %v673
    %v680 = vsel %vm44, %v666, 0
    %682 = vmatpush.bf16.msra.mxu0 0
    %683 = vmatpush.bf16.msra.mxu0 0
    %684 = vmatpush.bf16.msra.mxu0 0
    %685 = vmatpush.bf16.msra.mxu0 0
    %686 = vmatpush.bf16.msra.mxu0 0
    %687 = vmatpush.bf16.msra.mxu0 0
    %688 = vmatpush.bf16.msra.mxu0 %v676
    %689 = vmatpush.bf16.msra.mxu0 %v675
    %690 = vmatmul.bf16.gmra.mxu0 %v680
    %v691 = vpop.f32.mrf.mxu0
    %v692 = vadd.f32 %v660, %v691
    %v693 = vpop.f32.mrf.mxu0
    %v694 = vadd.f32 %v660, %v693
    %695 = vdwg.mxu0
    %v696 = vadd.f32 %v692, %v40
    %v697 = vadd.f32 %v694, %v41
    %v698 = vsel %vm44, %v696, 0.0
    %699 = vadd.xlane.f32.xlu0 %v698
    %v700 = vpop.xlane.xlu0 %699
    %v701 = vsel %vm44, %v697, 0.0
    %702 = vadd.xlane.f32.xlu0 %v701
    %v703 = vpop.xlane.xlu0 %702
    %v704 = vmul.f32 %v700, %v57
    %v705 = vmul.f32 %v703, %v57
    %v706 = vsub.f32 %v696, %v704
    %v707 = vsub.f32 %v697, %v705
    %v708 = vmul.f32 %v706, %v706
    %v709 = vmul.f32 %v707, %v707
    %v710 = vsel %vm44, %v708, 0.0
    %711 = vadd.xlane.f32.xlu0 %v710
    %v712 = vpop.xlane.xlu0 %711
    %v713 = vsel %vm44, %v709, 0.0
    %714 = vadd.xlane.f32.xlu0 %v713
    %v715 = vpop.xlane.xlu0 %714
    %v716 = vmul.f32 %v712, %v57
    %v717 = vmul.f32 %v715, %v57
    %v718 = vadd.f32 %v716, 1e-05
    %v719 = vadd.f32 %v717, 1e-05
    %v720 = vrsqrt.pop %v718
    %v721 = vmul.f32 %v720, %v718
    %v722 = vmul.f32 %v721, %v720
    %v723 = vmul.f32 0.5, %v722
    %v724 = vsub.f32 1.5, %v723
    %v725 = vmul.f32 %v720, %v724
    %vm726 = vweird.f32 %v718
    %vm727 = vweird.f32 %v720
    %vm728 = vmor %vm726, %vm727
    %v729 = vsel %vm728, %v720, %v725
    %v730 = vrsqrt.pop %v719
    %v731 = vmul.f32 %v730, %v719
    %v732 = vmul.f32 %v731, %v730
    %v733 = vmul.f32 0.5, %v732
    %v734 = vsub.f32 1.5, %v733
    %v735 = vmul.f32 %v730, %v734
    %vm736 = vweird.f32 %v719
    %vm737 = vweird.f32 %v730
    %vm738 = vmor %vm736, %vm737
    %v739 = vsel %vm738, %v730, %v735
    %v740 = vmul.f32 %v706, %v729
    %v741 = vmul.f32 %v707, %v739
    %v742 = vmul.f32 %v740, %v97
    %v743 = vmul.f32 %v741, %v97
    %v744 = vadd.f32 %v742, %v102
    %v745 = vadd.f32 %v743, %v102
    %v746 = vpack.c.bf16 %v745, %v744
    %v747 = vld [vmem:[%s7] sm:$0xf]
    %v748 = vld [vmem:[%s7 + $0x4] sm:$0xf]
    %v749 = vld [vmem:[%s7 + $0x8] sm:$0xf]
    %v750 = vld [vmem:[%s7 + $0xc] sm:$0xf]
    %v751 = vld [vmem:[%s8] sm:$0x1]
    %v753 = vperm.slane %v751, 0
    %v759 = vunpack.c.l.b16 %v747
    %v760 = vunpack.c.l.b16 %v748
    %v761 = vunpack.c.l.b16 %v749
    %v762 = vunpack.c.l.b16 %v750
    %v763 = vpack.c.b16 %v760, %v759
    %v764 = vpack.c.b16 %v762, %v761
    %v768 = vsel %vm44, %v746, 0
    %770 = vmatpush.bf16.msra.mxu0 0
    %771 = vmatpush.bf16.msra.mxu0 0
    %772 = vmatpush.bf16.msra.mxu0 0
    %773 = vmatpush.bf16.msra.mxu0 0
    %774 = vmatpush.bf16.msra.mxu0 0
    %775 = vmatpush.bf16.msra.mxu0 0
    %776 = vmatpush.bf16.msra.mxu0 %v764
    %777 = vmatpush.bf16.msra.mxu0 %v763
    %778 = vmatmul.bf16.gmra.mxu0 %v768
    %v779 = vpop.f32.mrf.mxu0
    %v780 = vadd.f32 %v753, %v779
    %v781 = vpop.f32.mrf.mxu0
    %v782 = vadd.f32 %v753, %v781
    %783 = vdwg.mxu0
    %v784 = vmul.f32 %v780, 0.5
    %v785 = vmul.f32 %v782, 0.5
    %v786 = vmul.f32 %v780, 0.70710677
    %v787 = vmul.f32 %v782, 0.70710677
    %v788 = vmul.f32 %v786, %v786
    %v789 = vmin.f32 16.0, %v788
    %v790 = vmul.f32 %v789, 2.1237322e-06
    %v791 = vadd.f32 %v790, 0.00028619796
    %v792 = vmul.f32 %v789, %v791
    %v793 = vadd.f32 %v792, 0.0036580483
    %v794 = vmul.f32 %v789, %v793
    %v795 = vadd.f32 %v794, 0.05243302
    %v796 = vmul.f32 %v789, %v795
    %v797 = vadd.f32 %v796, 0.18741608
    %v798 = vmul.f32 %v789, %v797
    %v799 = vadd.f32 %v798, 1.1283791
    %v800 = vmul.f32 %v786, %v799
    %v801 = vmul.f32 %v789, 3.8918573e-05
    %v802 = vadd.f32 %v801, 0.001143296
    %v803 = vmul.f32 %v789, %v802
    %v804 = vadd.f32 %v803, 0.014752088
    %v805 = vmul.f32 %v789, %v804
    %v806 = vadd.f32 %v805, 0.112945676
    %v807 = vmul.f32 %v789, %v806
    %v808 = vadd.f32 %v807, 0.4994258
    %v809 = vmul.f32 %v789, %v808
    %v810 = vadd.f32 %v809, 1.0
    %v811 = vrcp.pop %v810
    %v812 = vmul.f32 %v810, %v811
    %v813 = vsub.f32 1.0, %v812
    %v814 = vmul.f32 %v811, %v813
    %v815 = vadd.f32 %v811, %v814
    %vm816 = vweird.f32 %v810
    %vm817 = vweird.f32 %v811
    %vm818 = vmor %vm816, %vm817
    %v819 = vsel %vm818, %v811, %v815
    %v820 = vand.u32 2147483647, %v810
    %vm821 = vcmp.eq.f32.partialorder %v820, 8.507059e+37
    %v822 = vand.u32 %v810, 2147483648
    %v823 = vor.u32 1.1754944e-38, %v822
    %v824 = vsel %vm821, %v823, %v819
    %v825 = vmul.f32 %v800, %v824
    %v826 = vmin.f32 %v825, 1.0
    %v827 = vmax.f32 %v826, -1.0
    %v828 = vmul.f32 %v787, %v787
    %v829 = vmin.f32 16.0, %v828
    %v830 = vmul.f32 %v829, 2.1237322e-06
    %v831 = vadd.f32 %v830, 0.00028619796
    %v832 = vmul.f32 %v829, %v831
    %v833 = vadd.f32 %v832, 0.0036580483
    %v834 = vmul.f32 %v829, %v833
    %v835 = vadd.f32 %v834, 0.05243302
    %v836 = vmul.f32 %v829, %v835
    %v837 = vadd.f32 %v836, 0.18741608
    %v838 = vmul.f32 %v829, %v837
    %v839 = vadd.f32 %v838, 1.1283791
    %v840 = vmul.f32 %v787, %v839
    %v841 = vmul.f32 %v829, 3.8918573e-05
    %v842 = vadd.f32 %v841, 0.001143296
    %v843 = vmul.f32 %v829, %v842
    %v844 = vadd.f32 %v843, 0.014752088
    %v845 = vmul.f32 %v829, %v844
    %v846 = vadd.f32 %v845, 0.112945676
    %v847 = vmul.f32 %v829, %v846
    %v848 = vadd.f32 %v847, 0.4994258
    %v849 = vmul.f32 %v829, %v848
    %v850 = vadd.f32 %v849, 1.0
    %v851 = vrcp.pop %v850
    %v852 = vmul.f32 %v850, %v851
    %v853 = vsub.f32 1.0, %v852
    %v854 = vmul.f32 %v851, %v853
    %v855 = vadd.f32 %v851, %v854
    %vm856 = vweird.f32 %v850
    %vm857 = vweird.f32 %v851
    %vm858 = vmor %vm856, %vm857
    %v859 = vsel %vm858, %v851, %v855
    %v860 = vand.u32 2147483647, %v850
    %vm861 = vcmp.eq.f32.partialorder %v860, 8.507059e+37
    %v862 = vand.u32 %v850, 2147483648
    %v863 = vor.u32 1.1754944e-38, %v862
    %v864 = vsel %vm861, %v863, %v859
    %v865 = vmul.f32 %v840, %v864
    %v866 = vmin.f32 %v865, 1.0
    %v867 = vmax.f32 %v866, -1.0
    %v868 = vadd.f32 %v827, 1.0
    %v869 = vadd.f32 %v867, 1.0
    %v870 = vmul.f32 %v784, %v868
    %v871 = vmul.f32 %v785, %v869
    %v872 = vpack.c.bf16 %v871, %v870
    %v873 = vld [vmem:[%s9] sm:$0xf]
    %v874 = vld [vmem:[%s9 + $0x4] sm:$0xf]
    %v875 = vld [vmem:[%s9 + $0x8] sm:$0xf]
    %v876 = vld [vmem:[%s9 + $0xc] sm:$0xf]
    %v877 = vld [vmem:[%s9 + $0x10] sm:$0xf]
    %v878 = vld [vmem:[%s9 + $0x14] sm:$0xf]
    %v879 = vld [vmem:[%s9 + $0x18] sm:$0xf]
    %v880 = vld [vmem:[%s9 + $0x1c] sm:$0xf]
    %v881 = vld [vmem:[%s9 + $0x20] sm:$0xf]
    %v882 = vld [vmem:[%s9 + $0x24] sm:$0xf]
    %v883 = vld [vmem:[%s9 + $0x28] sm:$0xf]
    %v884 = vld [vmem:[%s9 + $0x2c] sm:$0xf]
    %v885 = vld [vmem:[%s9 + $0x30] sm:$0xf]
    %v886 = vld [vmem:[%s9 + $0x34] sm:$0xf]
    %v887 = vld [vmem:[%s9 + $0x38] sm:$0xf]
    %v888 = vld [vmem:[%s9 + $0x3c] sm:$0xf]
    %v889 = vld [vmem:[%s10] sm:$0x1]
    %v891 = vperm.slane %v889, 0
    %v909 = vunpack.c.l.b16 %v873
    %v910 = vunpack.c.l.b16 %v874
    %v911 = vunpack.c.l.b16 %v875
    %v912 = vunpack.c.l.b16 %v876
    %v913 = vunpack.c.l.b16 %v877
    %v914 = vunpack.c.l.b16 %v878
    %v915 = vunpack.c.l.b16 %v879
    %v916 = vunpack.c.l.b16 %v880
    %v917 = vunpack.c.l.b16 %v881
    %v918 = vunpack.c.l.b16 %v882
    %v919 = vunpack.c.l.b16 %v883
    %v920 = vunpack.c.l.b16 %v884
    %v921 = vunpack.c.l.b16 %v885
    %v922 = vunpack.c.l.b16 %v886
    %v923 = vunpack.c.l.b16 %v887
    %v924 = vunpack.c.l.b16 %v888
    %v925 = vpack.c.b16 %v910, %v909
    %v926 = vpack.c.b16 %v912, %v911
    %v927 = vpack.c.b16 %v914, %v913
    %v928 = vpack.c.b16 %v916, %v915
    %v929 = vpack.c.b16 %v918, %v917
    %v930 = vpack.c.b16 %v920, %v919
    %v931 = vpack.c.b16 %v922, %v921
    %v932 = vpack.c.b16 %v924, %v923
    %941 = vmatpush.bf16.msra.mxu0 %v932
    %942 = vmatpush.bf16.msra.mxu0 %v931
    %943 = vmatpush.bf16.msra.mxu0 %v930
    %944 = vmatpush.bf16.msra.mxu0 %v929
    %945 = vmatpush.bf16.msra.mxu0 %v928
    %946 = vmatpush.bf16.msra.mxu0 %v927
    %947 = vmatpush.bf16.msra.mxu0 %v926
    %948 = vmatpush.bf16.msra.mxu0 %v925
    %949 = vmatmul.bf16.gmra.mxu0 %v872
    %v950 = vpop.f32.mrf.mxu0
    %v951 = vadd.f32 %v891, %v950
    %v952 = vpop.f32.mrf.mxu0
    %v953 = vadd.f32 %v891, %v952
    %954 = vdwg.mxu0
    %v955 = vadd.f32 %v951, %v696
    %v956 = vadd.f32 %v953, %v697
    %957 = vst.msk [vmem:[#allocation3] sm:$0xff] %vm44, %v955
    %958 = vst.msk [vmem:[#allocation3 + $0x8] sm:$0xff] %vm44, %v956
    // Predicated region
    $region46: #{tpu_custom_call.1} parent=1 // pred_check
      _
    $region47: #{tpu_custom_call.1} parent=1 // pred_check_branch
      %960 = sbr.rel (0) target = $region49
    $region48: #{tpu_custom_call.1} parent=1 // pred_region
      %962 = vsyncadd [#allocation4], 0
      %s963 = sshll.u32 [#allocation3], 4
      %s964 = int_to_ptr.vmem [resolvable:$true] %s963
      %s965 = sshll.u32 %s11, 4
      %s966 = int_to_ptr.hbm [resolvable:$true] %s965
      %971 = dma.vmem_to_hbm [thread:$0]  %s964, 256, %s966, [#allocation4], 128, 128, 8
    $region49: #{tpu_custom_call.1} parent=1 // pred_fallthru
      _
    // Predicated region
    $region50: #{tpu_custom_call.1} parent=1 // pred_check
      _
    $region51: #{tpu_custom_call.1} parent=1 // pred_check_branch
      %973 = sbr.rel (0) target = $region53
    $region52: #{tpu_custom_call.1} parent=1 // pred_region
      %975 = dma.done [#allocation4], 256
    $region53: #{tpu_custom_call.1} parent=1 // pred_fallthru
      _
    %976 = vsyncpa [#allocation4], 1

</llo_original>
